<compile_context>
chip_gen: v7x
topology: tpu7x:2x2x1
jax: 0.10.0
libtpu: 0.0.40
codegen_flags: <defaults>
</compile_context>

<pallas_src>
import jax
import jax.numpy as jnp
from jax.experimental import pallas as pl
from jax.experimental.pallas import tpu as pltpu


def _round_up(x, m):
    return ((x + m - 1) // m) * m


def gate_kernel(s_ref, l_ref, w1s_ref, w1l_ref, b1_ref,
                w2_ref, b2_ref, w3_ref, b3_ref, out_ref):
    # ---- layer 1: fused concat  x @ W1 == s @ W1[:sd] + l @ W1[sd:] ----
    h = jnp.dot(s_ref[...], w1s_ref[...], preferred_element_type=jnp.float32)
    h = h + jnp.dot(l_ref[...], w1l_ref[...], preferred_element_type=jnp.float32)
    h = jnp.maximum(h + b1_ref[...], 0.0)

    # ---- layer 2: Linear + ReLU ----
    h = jnp.dot(h, w2_ref[...], preferred_element_type=jnp.float32)
    h = jnp.maximum(h + b2_ref[...], 0.0)

    # ---- layer 3: Linear (no activation) ----
    logits = jnp.dot(h, w3_ref[...], preferred_element_type=jnp.float32) + b3_ref[...]

    # ---- softmax over dim=1 (experts axis), exact normalization ----
    m = jnp.max(logits, axis=1, keepdims=True)
    e = jnp.exp(logits - m)
    out_ref[...] = e / jnp.sum(e, axis=1, keepdims=True)


def gate_network(state_t, latent_t, params, *, block_b=4096):
    """state_t: [B, state_dim], latent_t: [B, latent_dim] -> [B, num_experts]."""
    w1, b1, w2, b2, w3, b3 = params          # w1: [state_dim+latent_dim, h1]
    B, state_dim = state_t.shape
    latent_dim = latent_t.shape[1]
    h1 = w1.shape[1]
    h2 = w2.shape[1]
    num_experts = w3.shape[1]

    assert block_b % 8 == 0, "block_b must be a multiple of 8 sublanes"
    assert w1.shape[0] == state_dim + latent_dim

    # Split W1 so the concat is fused into layer 1 (tiny wrapper-side slices).
    w1s = w1[:state_dim]      # [state_dim,  h1]
    w1l = w1[state_dim:]      # [latent_dim, h1]

    # ---- batch tiling -------------------------------------------------------
    # n_steps >= 2 when B > 8 so v7x megacore can shard the parallel axis;
    # tb is a multiple of 8 and the last tile wastes at most 7 rows per step.
    if B > 8:
        n_steps = max(2, pl.cdiv(B, block_b))
    else:
        n_steps = 1
    tb = _round_up(pl.cdiv(B, n_steps), 8)
    grid = (pl.cdiv(B, tb),)

    resident = lambda shape: pl.BlockSpec(shape, lambda i: (0, 0))

    out = pl.pallas_call(
        gate_kernel,
        out_shape=jax.ShapeDtypeStruct((B, num_experts), jnp.float32),
        grid=grid,
        in_specs=[
            pl.BlockSpec((tb, state_dim), lambda i: (i, 0)),    # state:  batch-tiled
            pl.BlockSpec((tb, latent_dim), lambda i: (i, 0)),   # latent: batch-tiled
            resident((state_dim, h1)), resident((latent_dim, h1)), resident((1, h1)),
            resident((h1, h2)), resident((1, h2)),
            resident((h2, num_experts)), resident((1, num_experts)),
        ],
        out_specs=pl.BlockSpec((tb, num_experts), lambda i: (i, 0)),
        compiler_params=pltpu.CompilerParams(
            dimension_semantics=("parallel",),   # megacore sharding on v7x
        ),
    )(state_t, latent_t, w1s, w1l, b1, w2, b2, w3, b3)

    return out


def gate_network_ref(state_t, latent_t, params):
    """Pure-JAX f32 reference mirroring the PyTorch forward."""
    w1, b1, w2, b2, w3, b3 = params
    x = jnp.concatenate([state_t, latent_t], axis=1)
    h = jnp.maximum(x @ w1 + b1, 0.0)
    h = jnp.maximum(h @ w2 + b2, 0.0)
    logits = h @ w3 + b3
    return jax.nn.softmax(logits, axis=1)


def init_params(key, state_dim, latent_dim, dims):
    """dims = cfg.dim = [state_dim + latent_dim, h1, h2, num_experts]."""
    assert dims[0] == state_dim + latent_dim
    keys = jax.random.split(key, 6)
    scale = lambda fan_in: 1.0 / jnp.sqrt(fan_in)

    w1 = jax.random.uniform(keys[0], (dims[0], dims[1]), jnp.float32,
                            -scale(dims[0]), scale(dims[0]))
    b1 = jax.random.uniform(keys[1], (1, dims[1]), jnp.float32,
                            -scale(dims[0]), scale(dims[0]))
    w2 = jax.random.uniform(keys[2], (dims[1], dims[2]), jnp.float32,
                            -scale(dims[1]), scale(dims[1]))
    b2 = jax.random.uniform(keys[3], (1, dims[2]), jnp.float32,
                            -scale(dims[1]), scale(dims[1]))
    w3 = jax.random.uniform(keys[4], (dims[2], dims[3]), jnp.float32,
                            -scale(dims[2]), scale(dims[2]))
    b3 = jax.random.uniform(keys[5], (1, dims[3]), jnp.float32,
                            -scale(dims[2]), scale(dims[2]))
    return (w1, b1, w2, b2, w3, b3)


if __name__ == "__main__":
    key = jax.random.PRNGKey(0)
    k_state, k_latent, k_param = jax.random.split(key, 3)

    # Small shapes consistent with the module's forward signature.
    batch_size = 8
    state_dim = 12
    latent_dim = 20
    cfg_dim = [state_dim + latent_dim, 64, 32, 8]  # cfg.dim ; num_experts = 8

    state_t = jax.random.normal(k_state, (batch_size, state_dim), jnp.float32)
    latent_t = jax.random.normal(k_latent, (batch_size, latent_dim), jnp.float32)
    params = init_params(k_param, state_dim, latent_dim, cfg_dim)

    out = gate_network(state_t, latent_t, params)
    out = jax.block_until_ready(out)

    ref = gate_network_ref(state_t, latent_t, params)
    assert out.shape == (batch_size, cfg_dim[-1])
    # Value tolerance allows for the MXU's default (possibly bf16-pass) matmul
    # precision; the softmax normalization is exact, so rows sum to 1 tightly.
    assert jnp.allclose(out, ref, atol=2e-2, rtol=2e-2)
    assert jnp.allclose(jnp.sum(out, axis=1), 1.0, atol=1e-5)

    print("KERNEL_OK")
</pallas_src>

<mosaic_0001>
module attributes {stable_mosaic.version = 11 : i64} {
  func.func @gate_kernel(%arg0: i32, %arg1: memref<8x12xf32, #tpu.memory_space<vmem>>, %arg2: memref<8x20xf32, #tpu.memory_space<vmem>>, %arg3: memref<12x64xf32, #tpu.memory_space<vmem>>, %arg4: memref<20x64xf32, #tpu.memory_space<vmem>>, %arg5: memref<1x64xf32, #tpu.memory_space<vmem>>, %arg6: memref<64x32xf32, #tpu.memory_space<vmem>>, %arg7: memref<1x32xf32, #tpu.memory_space<vmem>>, %arg8: memref<32x8xf32, #tpu.memory_space<vmem>>, %arg9: memref<1x8xf32, #tpu.memory_space<vmem>>, %arg10: memref<8x8xf32, #tpu.memory_space<vmem>>) attributes {dimension_semantics = [#tpu.dimension_semantics<parallel>], iteration_bounds = array<i64: 1>, scalar_prefetch = 0 : i64, scratch_operands = 0 : i64, tpu.core_type = #tpu.core_type<tc>, window_params = [{transform_indices = @transform_0, window_bounds = array<i64: 8, 12>}, {transform_indices = @transform_1, window_bounds = array<i64: 8, 20>}, {pipeline_mode = #tpu.pipeline_mode<synchronous>, transform_indices = @transform_2, window_bounds = array<i64: 12, 64>}, {pipeline_mode = #tpu.pipeline_mode<synchronous>, transform_indices = @transform_3, window_bounds = array<i64: 20, 64>}, {pipeline_mode = #tpu.pipeline_mode<synchronous>, transform_indices = @transform_4, window_bounds = array<i64: 1, 64>}, {pipeline_mode = #tpu.pipeline_mode<synchronous>, transform_indices = @transform_5, window_bounds = array<i64: 64, 32>}, {pipeline_mode = #tpu.pipeline_mode<synchronous>, transform_indices = @transform_6, window_bounds = array<i64: 1, 32>}, {pipeline_mode = #tpu.pipeline_mode<synchronous>, transform_indices = @transform_7, window_bounds = array<i64: 32, 8>}, {pipeline_mode = #tpu.pipeline_mode<synchronous>, transform_indices = @transform_8, window_bounds = array<i64: 1, 8>}, {transform_indices = @transform_9, window_bounds = array<i64: 8, 8>}]} {
    %c0 = arith.constant 0 : index
    %c0_0 = arith.constant 0 : index
    %0 = vector.load %arg1[%c0, %c0_0] : memref<8x12xf32, #tpu.memory_space<vmem>>, vector<8x12xf32>
    %c0_1 = arith.constant 0 : index
    %c0_2 = arith.constant 0 : index
    %1 = vector.load %arg3[%c0_1, %c0_2] : memref<12x64xf32, #tpu.memory_space<vmem>>, vector<12x64xf32>
    %cst = arith.constant dense<0.000000e+00> : vector<8x64xf32>
    %2 = tpu.matmul %0, %1, %cst {dimension_numbers = #tpu.dot_dimension_numbers<[1], [0], [0], [1], [0, 0, 1, 1], [], []>} : vector<8x12xf32>, vector<12x64xf32>, vector<8x64xf32> -> vector<8x64xf32>
    %c0_3 = arith.constant 0 : index
    %c0_4 = arith.constant 0 : index
    %3 = vector.load %arg2[%c0_3, %c0_4] : memref<8x20xf32, #tpu.memory_space<vmem>>, vector<8x20xf32>
    %c0_5 = arith.constant 0 : index
    %c0_6 = arith.constant 0 : index
    %4 = vector.load %arg4[%c0_5, %c0_6] : memref<20x64xf32, #tpu.memory_space<vmem>>, vector<20x64xf32>
    %cst_7 = arith.constant dense<0.000000e+00> : vector<8x64xf32>
    %5 = tpu.matmul %3, %4, %cst_7 {dimension_numbers = #tpu.dot_dimension_numbers<[1], [0], [0], [1], [0, 0, 1, 1], [], []>} : vector<8x20xf32>, vector<20x64xf32>, vector<8x64xf32> -> vector<8x64xf32>
    %6 = arith.addf %2, %5 : vector<8x64xf32>
    %c0_8 = arith.constant 0 : index
    %c0_9 = arith.constant 0 : index
    %7 = vector.load %arg5[%c0_8, %c0_9] : memref<1x64xf32, #tpu.memory_space<vmem>>, vector<1x64xf32>
    %8 = vector.broadcast %7 : vector<1x64xf32> to vector<8x64xf32>
    %9 = arith.addf %6, %8 : vector<8x64xf32>
    %cst_10 = arith.constant 0.000000e+00 : f32
    %10 = vector.broadcast %cst_10 : f32 to vector<8x64xf32>
    %11 = arith.maximumf %9, %10 : vector<8x64xf32>
    %c0_11 = arith.constant 0 : index
    %c0_12 = arith.constant 0 : index
    %12 = vector.load %arg6[%c0_11, %c0_12] : memref<64x32xf32, #tpu.memory_space<vmem>>, vector<64x32xf32>
    %cst_13 = arith.constant dense<0.000000e+00> : vector<8x32xf32>
    %13 = tpu.matmul %11, %12, %cst_13 {dimension_numbers = #tpu.dot_dimension_numbers<[1], [0], [0], [1], [0, 0, 1, 1], [], []>} : vector<8x64xf32>, vector<64x32xf32>, vector<8x32xf32> -> vector<8x32xf32>
    %c0_14 = arith.constant 0 : index
    %c0_15 = arith.constant 0 : index
    %14 = vector.load %arg7[%c0_14, %c0_15] : memref<1x32xf32, #tpu.memory_space<vmem>>, vector<1x32xf32>
    %15 = vector.broadcast %14 : vector<1x32xf32> to vector<8x32xf32>
    %16 = arith.addf %13, %15 : vector<8x32xf32>
    %cst_16 = arith.constant 0.000000e+00 : f32
    %17 = vector.broadcast %cst_16 : f32 to vector<8x32xf32>
    %18 = arith.maximumf %16, %17 : vector<8x32xf32>
    %c0_17 = arith.constant 0 : index
    %c0_18 = arith.constant 0 : index
    %19 = vector.load %arg8[%c0_17, %c0_18] : memref<32x8xf32, #tpu.memory_space<vmem>>, vector<32x8xf32>
    %cst_19 = arith.constant dense<0.000000e+00> : vector<8x8xf32>
    %20 = tpu.matmul %18, %19, %cst_19 {dimension_numbers = #tpu.dot_dimension_numbers<[1], [0], [0], [1], [0, 0, 1, 1], [], []>} : vector<8x32xf32>, vector<32x8xf32>, vector<8x8xf32> -> vector<8x8xf32>
    %c0_20 = arith.constant 0 : index
    %c0_21 = arith.constant 0 : index
    %21 = vector.load %arg9[%c0_20, %c0_21] : memref<1x8xf32, #tpu.memory_space<vmem>>, vector<1x8xf32>
    %22 = vector.broadcast %21 : vector<1x8xf32> to vector<8x8xf32>
    %23 = arith.addf %20, %22 : vector<8x8xf32>
    %cst_22 = arith.constant dense<0xFF800000> : vector<8xf32>
    %24 = vector.multi_reduction <maximumf>, %23, %cst_22 [1] : vector<8x8xf32> to vector<8xf32>
    %25 = vector.shape_cast %24 : vector<8xf32> to vector<8x1xf32>
    %26 = vector.broadcast %25 : vector<8x1xf32> to vector<8x8xf32>
    %27 = arith.subf %23, %26 : vector<8x8xf32>
    %28 = math.exp %27 : vector<8x8xf32>
    %cst_23 = arith.constant dense<0.000000e+00> : vector<8xf32>
    %29 = vector.multi_reduction <add>, %28, %cst_23 [1] : vector<8x8xf32> to vector<8xf32>
    %30 = vector.shape_cast %29 : vector<8xf32> to vector<8x1xf32>
    %31 = vector.broadcast %30 : vector<8x1xf32> to vector<8x8xf32>
    %32 = arith.divf %28, %31 : vector<8x8xf32>
    %c0_24 = arith.constant 0 : index
    %c0_25 = arith.constant 0 : index
    %33 = vector.load %arg10[%c0_24, %c0_25] : memref<8x8xf32, #tpu.memory_space<vmem>>, vector<8x8xf32>
    tpu.vector_store %arg10[%c0_24, %c0_25], %32 {strides = array<i32>} : memref<8x8xf32, #tpu.memory_space<vmem>>, vector<8x8xf32>,
    return
  }
  func.func @transform_0(%arg0: i32) -> (i32, i32) {
    %c0_i32 = arith.constant 0 : i32
    %c0_i32_0 = arith.constant 0 : i32
    return %arg0, %c0_i32 : i32, i32
  }
  func.func @transform_1(%arg0: i32) -> (i32, i32) {
    %c0_i32 = arith.constant 0 : i32
    %c0_i32_0 = arith.constant 0 : i32
    return %arg0, %c0_i32 : i32, i32
  }
  func.func @transform_2(%arg0: i32) -> (i32, i32) {
    %c0_i32 = arith.constant 0 : i32
    %c0_i32_0 = arith.constant 0 : i32
    %c0_i32_1 = arith.constant 0 : i32
    return %c0_i32, %c0_i32_0 : i32, i32
  }
  func.func @transform_3(%arg0: i32) -> (i32, i32) {
    %c0_i32 = arith.constant 0 : i32
    %c0_i32_0 = arith.constant 0 : i32
    %c0_i32_1 = arith.constant 0 : i32
    return %c0_i32, %c0_i32_0 : i32, i32
  }
  func.func @transform_4(%arg0: i32) -> (i32, i32) {
    %c0_i32 = arith.constant 0 : i32
    %c0_i32_0 = arith.constant 0 : i32
    %c0_i32_1 = arith.constant 0 : i32
    return %c0_i32, %c0_i32_0 : i32, i32
  }
  func.func @transform_5(%arg0: i32) -> (i32, i32) {
    %c0_i32 = arith.constant 0 : i32
    %c0_i32_0 = arith.constant 0 : i32
    %c0_i32_1 = arith.constant 0 : i32
    return %c0_i32, %c0_i32_0 : i32, i32
  }
  func.func @transform_6(%arg0: i32) -> (i32, i32) {
    %c0_i32 = arith.constant 0 : i32
    %c0_i32_0 = arith.constant 0 : i32
    %c0_i32_1 = arith.constant 0 : i32
    return %c0_i32, %c0_i32_0 : i32, i32
  }
  func.func @transform_7(%arg0: i32) -> (i32, i32) {
    %c0_i32 = arith.constant 0 : i32
    %c0_i32_0 = arith.constant 0 : i32
    %c0_i32_1 = arith.constant 0 : i32
    return %c0_i32, %c0_i32_0 : i32, i32
  }
  func.func @transform_8(%arg0: i32) -> (i32, i32) {
    %c0_i32 = arith.constant 0 : i32
    %c0_i32_0 = arith.constant 0 : i32
    %c0_i32_1 = arith.constant 0 : i32
    return %c0_i32, %c0_i32_0 : i32, i32
  }
  func.func @transform_9(%arg0: i32) -> (i32, i32) {
    %c0_i32 = arith.constant 0 : i32
    %c0_i32_0 = arith.constant 0 : i32
    return %arg0, %c0_i32 : i32, i32
  }
}

</mosaic_0001>

<llo_original>
// kernel: tpu_custom_call.1
$region0: #{tpu_custom_call.1}
  #allocation0 [shape = 'u32[]', space=smem, size = 0x4, offset = 0x4, fixed_abs, tag = 'smem constant byte address 0x4 - core index']
  #allocation1 [shape = 'u32[144,128]{1,0:T(1,128)}', space=vmem, size = 0x12000, scoped, tag = 'internal scratch']
  %s0 = inlined_call_operand.vmem [shape: f32[8,12], index: 0, kind: input, shape index: {}]
  %s1 = inlined_call_operand.vmem [shape: f32[8,20], index: 1, kind: input, shape index: {}]
  %s2 = inlined_call_operand.vmem [shape: f32[12,64], index: 2, kind: input, shape index: {}]
  %s3 = inlined_call_operand.vmem [shape: f32[20,64], index: 3, kind: input, shape index: {}]
  %s4 = inlined_call_operand.vmem [shape: f32[1,64], index: 4, kind: input, shape index: {}]
  %s5 = inlined_call_operand.vmem [shape: f32[64,32], index: 5, kind: input, shape index: {}]
  %s6 = inlined_call_operand.vmem [shape: f32[1,32], index: 6, kind: input, shape index: {}]
  %s7 = inlined_call_operand.vmem [shape: f32[32,8], index: 7, kind: input, shape index: {}]
  %s8 = inlined_call_operand.vmem [shape: f32[1,8], index: 8, kind: input, shape index: {}]
  %s9 = inlined_call_operand.hbm [shape: f32[8,8], index: 9, kind: output, shape index: {}]
  %s10 = sld [smem:[#allocation0]]
  $region46: #{tpu_custom_call.1} parent=0
    _
  %s12 = ssub.s32 1, %s10
  %s13 = scalar_select 0, %s12, %s10
  $region1: #{tpu_custom_call.1} parent=0
    #allocation2 [shape = 'u8[4096]{0}', space=vmem, size = 0x1000, scoped, tag = 'output window, operand 0, single buffered']
    #allocation3 [shape = 's32[1]{0}', space=sflag, size = 0x4, scoped, tag = 'scoped memory for tpu_custom_call.1']
    %14 = vsyncpa [#allocation3], 0
    // Predicated region
    $region2: #{tpu_custom_call.1} parent=1 // pred_check
      _
    $region3: #{tpu_custom_call.1} parent=1 // pred_check_branch
      %16 = sbr.rel (0) target = $region5
    $region4: #{tpu_custom_call.1} parent=1 // pred_region
      _
    $region5: #{tpu_custom_call.1} parent=1 // pred_fallthru
      _
    // Predicated region
    $region6: #{tpu_custom_call.1} parent=1 // pred_check
      _
    $region7: #{tpu_custom_call.1} parent=1 // pred_check_branch
      %18 = sbr.rel (0) target = $region9
    $region8: #{tpu_custom_call.1} parent=1 // pred_region
      _
    $region9: #{tpu_custom_call.1} parent=1 // pred_fallthru
      _
    // Predicated region
    $region10: #{tpu_custom_call.1} parent=1 // pred_check
      _
    $region11: #{tpu_custom_call.1} parent=1 // pred_check_branch
      %20 = sbr.rel (0) target = $region13
    $region12: #{tpu_custom_call.1} parent=1 // pred_region
      _
    $region13: #{tpu_custom_call.1} parent=1 // pred_fallthru
      _
    // Predicated region
    $region14: #{tpu_custom_call.1} parent=1 // pred_check
      _
    $region15: #{tpu_custom_call.1} parent=1 // pred_check_branch
      %22 = sbr.rel (0) target = $region17
    $region16: #{tpu_custom_call.1} parent=1 // pred_region
      _
    $region17: #{tpu_custom_call.1} parent=1 // pred_fallthru
      _
    // Predicated region
    $region18: #{tpu_custom_call.1} parent=1 // pred_check
      _
    $region19: #{tpu_custom_call.1} parent=1 // pred_check_branch
      %24 = sbr.rel (0) target = $region21
    $region20: #{tpu_custom_call.1} parent=1 // pred_region
      _
    $region21: #{tpu_custom_call.1} parent=1 // pred_fallthru
      _
    // Predicated region
    $region22: #{tpu_custom_call.1} parent=1 // pred_check
      _
    $region23: #{tpu_custom_call.1} parent=1 // pred_check_branch
      %26 = sbr.rel (0) target = $region25
    $region24: #{tpu_custom_call.1} parent=1 // pred_region
      _
    $region25: #{tpu_custom_call.1} parent=1 // pred_fallthru
      _
    // Predicated region
    $region26: #{tpu_custom_call.1} parent=1 // pred_check
      _
    $region27: #{tpu_custom_call.1} parent=1 // pred_check_branch
      %28 = sbr.rel (0) target = $region29
    $region28: #{tpu_custom_call.1} parent=1 // pred_region
      _
    $region29: #{tpu_custom_call.1} parent=1 // pred_fallthru
      _
    // Predicated region
    $region30: #{tpu_custom_call.1} parent=1 // pred_check
      _
    $region31: #{tpu_custom_call.1} parent=1 // pred_check_branch
      %30 = sbr.rel (0) target = $region33
    $region32: #{tpu_custom_call.1} parent=1 // pred_region
      _
    $region33: #{tpu_custom_call.1} parent=1 // pred_fallthru
      _
    // Predicated region
    $region34: #{tpu_custom_call.1} parent=1 // pred_check
      _
    $region35: #{tpu_custom_call.1} parent=1 // pred_check_branch
      %32 = sbr.rel (0) target = $region37
    $region36: #{tpu_custom_call.1} parent=1 // pred_region
      _
    $region37: #{tpu_custom_call.1} parent=1 // pred_fallthru
      _
    %v33 = vld [vmem:[%s0] sm:$0xff]
    %v34 = vld [vmem:[%s2] sm:$0xff]
    %v35 = vld [vmem:[%s2 + $0x8] sm:$0xf]
    %v36 = vld [vmem:[%s1] sm:$0xff]
    %v37 = vld [vmem:[%s3] sm:$0xff]
    %v38 = vld [vmem:[%s3 + $0x8] sm:$0xff]
    %v39 = vld [vmem:[%s3 + $0x10] sm:$0xf]
    %vm40 = vcmask 162816
    %v42 = vsel %vm40, %v36, 0
    %vm44 = vcmask 1043456
    %v46 = vsel %vm44, %v39, 0
    %48 = vmatprep.subr.mxu0 0.0
    %49 = vmatpush1.msra.mxu0 %v37
    %50 = vmatprep.subr.mxu0 0.0
    %51 = vmatpush1.msra.mxu0 %v38
    %52 = vmatprep.subr.mxu0 0.0
    %53 = vmatpush1.msra.mxu0 %v46
    %54 = vmatprep.subr.mxu0 0.0
    %55 = vmatpush1.msra.mxu0 0.0
    %56 = vmatprep.subr.mxu0 0.0
    %57 = vmatpush1.msra.mxu0 0.0
    %58 = vmatprep.subr.mxu0 0.0
    %59 = vmatpush1.msra.mxu0 0.0
    %60 = vmatprep.subr.mxu0 0.0
    %61 = vmatpush1.msra.mxu0 0.0
    %62 = vmatprep.subr.mxu0 0.0
    %63 = vmatpush1.msra.mxu0 0.0
    %64 = vmatprep.subr.mxu0 0.0
    %65 = vmatpush1.msra.mxu0 0.0
    %66 = vmatprep.subr.mxu0 0.0
    %67 = vmatpush1.msra.mxu0 0.0
    %68 = vmatprep.subr.mxu0 0.0
    %69 = vmatpush1.msra.mxu0 0.0
    %70 = vmatprep.subr.mxu0 0.0
    %71 = vmatpush1.msra.mxu0 0.0
    %72 = vmatprep.subr.mxu0 0.0
    %73 = vmatpush1.msra.mxu0 0.0
    %74 = vmatprep.subr.mxu0 0.0
    %75 = vmatpush1.msra.mxu0 0.0
    %76 = vmatprep.subr.mxu0 0.0
    %77 = vmatpush1.msra.mxu0 0.0
    %78 = vmatprep.subr.mxu0 0.0
    %79 = vmatpush1.msra.mxu0 0.0
    %80 = vmatprep.subr.mxu0 0.0
    %81 = vmatpush1.msra.mxu0 0.0
    %82 = vmatprep.subr.mxu0 0.0
    %83 = vmatpush1.msra.mxu0 0.0
    %84 = vmatprep.subr.mxu0 0.0
    %85 = vmatpush1.msra.mxu0 0.0
    %86 = vmatprep.subr.mxu0 0.0
    %87 = vmatpush1.msra.mxu0 0.0
    %88 = vmatprep.subr.mxu0 0.0
    %89 = vmatpush1.msra.mxu0 0.0
    %90 = vmatprep.subr.mxu0 0.0
    %91 = vmatpush1.msra.mxu0 0.0
    %92 = vmatprep.subr.mxu0 0.0
    %93 = vmatpush1.msra.mxu0 0.0
    %94 = vmatprep.subr.mxu0 0.0
    %95 = vmatpush1.msra.mxu0 0.0
    %96 = vmatprep.subr.mxu0 0.0
    %97 = vmatpush1.msra.mxu0 0.0
    %98 = vmatprep.subr.mxu0 0.0
    %99 = vmatpush1.msra.mxu0 0.0
    %100 = vmatprep.subr.mxu0 0.0
    %101 = vmatpush1.msra.mxu0 0.0
    %102 = vmatprep.subr.mxu0 0.0
    %103 = vmatpush1.msra.mxu0 0.0
    %104 = vmatprep.subr.mxu0 0.0
    %105 = vmatpush1.msra.mxu0 0.0
    %106 = vmatprep.subr.mxu0 0.0
    %107 = vmatpush1.msra.mxu0 0.0
    %108 = vmatprep.subr.mxu0 0.0
    %109 = vmatpush1.msra.mxu0 0.0
    %110 = vmatprep.subr.mxu0 0.0
    %111 = vmatpush1.msra.mxu0 0.0
    %112 = vmatprep.mubr.f32.mxu0 0.0
    %113 = vmatmul.mubr.f32.gmra.mrb[0].mxu0 %v42
    %v114 = vpop.f32.mrb[0].mxu0
    %v115 = vadd.f32 0.0, %v114
    %v116 = vpop.f32.mrb[0].mxu0
    %117 = vdwg.mxu0
    %vm118 = vcmask 97280
    %v120 = vsel %vm118, %v33, 0
    %v123 = vsel %vm44, %v35, 0
    %125 = vmatprep.subr.mxu0 0.0
    %126 = vmatpush1.msra.mxu0 %v34
    %127 = vmatprep.subr.mxu0 0.0
    %128 = vmatpush1.msra.mxu0 %v123
    %129 = vmatprep.subr.mxu0 0.0
    %130 = vmatpush1.msra.mxu0 0.0
    %131 = vmatprep.subr.mxu0 0.0
    %132 = vmatpush1.msra.mxu0 0.0
    %133 = vmatprep.subr.mxu0 0.0
    %134 = vmatpush1.msra.mxu0 0.0
    %135 = vmatprep.subr.mxu0 0.0
    %136 = vmatpush1.msra.mxu0 0.0
    %137 = vmatprep.subr.mxu0 0.0
    %138 = vmatpush1.msra.mxu0 0.0
    %139 = vmatprep.subr.mxu0 0.0
    %140 = vmatpush1.msra.mxu0 0.0
    %141 = vmatprep.subr.mxu0 0.0
    %142 = vmatpush1.msra.mxu0 0.0
    %143 = vmatprep.subr.mxu0 0.0
    %144 = vmatpush1.msra.mxu0 0.0
    %145 = vmatprep.subr.mxu0 0.0
    %146 = vmatpush1.msra.mxu0 0.0
    %147 = vmatprep.subr.mxu0 0.0
    %148 = vmatpush1.msra.mxu0 0.0
    %149 = vmatprep.subr.mxu0 0.0
    %150 = vmatpush1.msra.mxu0 0.0
    %151 = vmatprep.subr.mxu0 0.0
    %152 = vmatpush1.msra.mxu0 0.0
    %153 = vmatprep.subr.mxu0 0.0
    %154 = vmatpush1.msra.mxu0 0.0
    %155 = vmatprep.subr.mxu0 0.0
    %156 = vmatpush1.msra.mxu0 0.0
    %157 = vmatprep.subr.mxu0 0.0
    %158 = vmatpush1.msra.mxu0 0.0
    %159 = vmatprep.subr.mxu0 0.0
    %160 = vmatpush1.msra.mxu0 0.0
    %161 = vmatprep.subr.mxu0 0.0
    %162 = vmatpush1.msra.mxu0 0.0
    %163 = vmatprep.subr.mxu0 0.0
    %164 = vmatpush1.msra.mxu0 0.0
    %165 = vmatprep.subr.mxu0 0.0
    %166 = vmatpush1.msra.mxu0 0.0
    %167 = vmatprep.subr.mxu0 0.0
    %168 = vmatpush1.msra.mxu0 0.0
    %169 = vmatprep.subr.mxu0 0.0
    %170 = vmatpush1.msra.mxu0 0.0
    %171 = vmatprep.subr.mxu0 0.0
    %172 = vmatpush1.msra.mxu0 0.0
    %173 = vmatprep.subr.mxu0 0.0
    %174 = vmatpush1.msra.mxu0 0.0
    %175 = vmatprep.subr.mxu0 0.0
    %176 = vmatpush1.msra.mxu0 0.0
    %177 = vmatprep.subr.mxu0 0.0
    %178 = vmatpush1.msra.mxu0 0.0
    %179 = vmatprep.subr.mxu0 0.0
    %180 = vmatpush1.msra.mxu0 0.0
    %181 = vmatprep.subr.mxu0 0.0
    %182 = vmatpush1.msra.mxu0 0.0
    %183 = vmatprep.subr.mxu0 0.0
    %184 = vmatpush1.msra.mxu0 0.0
    %185 = vmatprep.subr.mxu0 0.0
    %186 = vmatpush1.msra.mxu0 0.0
    %187 = vmatprep.subr.mxu0 0.0
    %188 = vmatpush1.msra.mxu0 0.0
    %189 = vmatprep.mubr.f32.mxu0 0.0
    %190 = vmatmul.mubr.f32.gmra.mrb[0].mxu0 %v120
    %v191 = vpop.f32.mrb[0].mxu0
    %v192 = vadd.f32 %v115, %v191
    %v193 = vpop.f32.mrb[0].mxu0
    %194 = vdwg.mxu0
    %v195 = vld [vmem:[%s4] sm:$0x1]
    %v197 = vlaneseq
    %v198 = vshrl.u32 %v197, 7
    %v199 = vsub.s32 0, %v198
    %v200 = vrot.slane %v195, %v199
    %v202 = vadd.f32 %v192, %v200
    %v203 = vmax.f32 %v202, 0.0
    %v204 = vld [vmem:[%s5] sm:$0xff]
    %v205 = vld [vmem:[%s5 + $0x8] sm:$0xff]
    %v206 = vld [vmem:[%s5 + $0x10] sm:$0xff]
    %v207 = vld [vmem:[%s5 + $0x18] sm:$0xff]
    %v208 = vld [vmem:[%s5 + $0x20] sm:$0xff]
    %v209 = vld [vmem:[%s5 + $0x28] sm:$0xff]
    %v210 = vld [vmem:[%s5 + $0x30] sm:$0xff]
    %v211 = vld [vmem:[%s5 + $0x38] sm:$0xff]
    %v212 = vld [vmem:[%s6] sm:$0x1]
    %v214 = vlaneseq
    %v215 = vshrl.u32 %v214, 7
    %v216 = vsub.s32 0, %v215
    %v217 = vrot.slane %v212, %v216
    %vm219 = vcmask 523264
    %v221 = vsel %vm219, %v203, 0
    %223 = vmatprep.subr.mxu0 0.0
    %224 = vmatpush1.msra.mxu0 %v204
    %225 = vmatprep.subr.mxu0 0.0
    %226 = vmatpush1.msra.mxu0 %v205
    %227 = vmatprep.subr.mxu0 0.0
    %228 = vmatpush1.msra.mxu0 %v206
    %229 = vmatprep.subr.mxu0 0.0
    %230 = vmatpush1.msra.mxu0 %v207
    %231 = vmatprep.subr.mxu0 0.0
    %232 = vmatpush1.msra.mxu0 %v208
    %233 = vmatprep.subr.mxu0 0.0
    %234 = vmatpush1.msra.mxu0 %v209
    %235 = vmatprep.subr.mxu0 0.0
    %236 = vmatpush1.msra.mxu0 %v210
    %237 = vmatprep.subr.mxu0 0.0
    %238 = vmatpush1.msra.mxu0 %v211
    %239 = vmatprep.subr.mxu0 0.0
    %240 = vmatpush1.msra.mxu0 0.0
    %241 = vmatprep.subr.mxu0 0.0
    %242 = vmatpush1.msra.mxu0 0.0
    %243 = vmatprep.subr.mxu0 0.0
    %244 = vmatpush1.msra.mxu0 0.0
    %245 = vmatprep.subr.mxu0 0.0
    %246 = vmatpush1.msra.mxu0 0.0
    %247 = vmatprep.subr.mxu0 0.0
    %248 = vmatpush1.msra.mxu0 0.0
    %249 = vmatprep.subr.mxu0 0.0
    %250 = vmatpush1.msra.mxu0 0.0
    %251 = vmatprep.subr.mxu0 0.0
    %252 = vmatpush1.msra.mxu0 0.0
    %253 = vmatprep.subr.mxu0 0.0
    %254 = vmatpush1.msra.mxu0 0.0
    %255 = vmatprep.subr.mxu0 0.0
    %256 = vmatpush1.msra.mxu0 0.0
    %257 = vmatprep.subr.mxu0 0.0
    %258 = vmatpush1.msra.mxu0 0.0
    %259 = vmatprep.subr.mxu0 0.0
    %260 = vmatpush1.msra.mxu0 0.0
    %261 = vmatprep.subr.mxu0 0.0
    %262 = vmatpush1.msra.mxu0 0.0
    %263 = vmatprep.subr.mxu0 0.0
    %264 = vmatpush1.msra.mxu0 0.0
    %265 = vmatprep.subr.mxu0 0.0
    %266 = vmatpush1.msra.mxu0 0.0
    %267 = vmatprep.subr.mxu0 0.0
    %268 = vmatpush1.msra.mxu0 0.0
    %269 = vmatprep.subr.mxu0 0.0
    %270 = vmatpush1.msra.mxu0 0.0
    %271 = vmatprep.subr.mxu0 0.0
    %272 = vmatpush1.msra.mxu0 0.0
    %273 = vmatprep.subr.mxu0 0.0
    %274 = vmatpush1.msra.mxu0 0.0
    %275 = vmatprep.subr.mxu0 0.0
    %276 = vmatpush1.msra.mxu0 0.0
    %277 = vmatprep.subr.mxu0 0.0
    %278 = vmatpush1.msra.mxu0 0.0
    %279 = vmatprep.subr.mxu0 0.0
    %280 = vmatpush1.msra.mxu0 0.0
    %281 = vmatprep.subr.mxu0 0.0
    %282 = vmatpush1.msra.mxu0 0.0
    %283 = vmatprep.subr.mxu0 0.0
    %284 = vmatpush1.msra.mxu0 0.0
    %285 = vmatprep.subr.mxu0 0.0
    %286 = vmatpush1.msra.mxu0 0.0
    %287 = vmatprep.mubr.f32.mxu0 0.0
    %288 = vmatmul.mubr.f32.gmra.mrb[0].mxu0 %v221
    %v289 = vpop.f32.mrb[0].mxu0
    %v290 = vadd.f32 %v217, %v289
    %v291 = vpop.f32.mrb[0].mxu0
    %292 = vdwg.mxu0
    %v293 = vmax.f32 %v290, 0.0
    %v294 = vld [vmem:[%s7] sm:$0xff]
    %v295 = vld [vmem:[%s7 + $0x8] sm:$0xff]
    %v296 = vld [vmem:[%s7 + $0x10] sm:$0xff]
    %v297 = vld [vmem:[%s7 + $0x18] sm:$0xff]
    %v298 = vld [vmem:[%s8] sm:$0x1]
    %v300 = vlaneseq
    %v301 = vshrl.u32 %v300, 7
    %v302 = vsub.s32 0, %v301
    %v303 = vrot.slane %v298, %v302
    %vm305 = vcmask 261120
    %v307 = vsel %vm305, %v293, 0
    %309 = vmatprep.subr.mxu0 0.0
    %310 = vmatpush1.msra.mxu0 %v294
    %311 = vmatprep.subr.mxu0 0.0
    %312 = vmatpush1.msra.mxu0 %v295
    %313 = vmatprep.subr.mxu0 0.0
    %314 = vmatpush1.msra.mxu0 %v296
    %315 = vmatprep.subr.mxu0 0.0
    %316 = vmatpush1.msra.mxu0 %v297
    %317 = vmatprep.subr.mxu0 0.0
    %318 = vmatpush1.msra.mxu0 0.0
    %319 = vmatprep.subr.mxu0 0.0
    %320 = vmatpush1.msra.mxu0 0.0
    %321 = vmatprep.subr.mxu0 0.0
    %322 = vmatpush1.msra.mxu0 0.0
    %323 = vmatprep.subr.mxu0 0.0
    %324 = vmatpush1.msra.mxu0 0.0
    %325 = vmatprep.subr.mxu0 0.0
    %326 = vmatpush1.msra.mxu0 0.0
    %327 = vmatprep.subr.mxu0 0.0
    %328 = vmatpush1.msra.mxu0 0.0
    %329 = vmatprep.subr.mxu0 0.0
    %330 = vmatpush1.msra.mxu0 0.0
    %331 = vmatprep.subr.mxu0 0.0
    %332 = vmatpush1.msra.mxu0 0.0
    %333 = vmatprep.subr.mxu0 0.0
    %334 = vmatpush1.msra.mxu0 0.0
    %335 = vmatprep.subr.mxu0 0.0
    %336 = vmatpush1.msra.mxu0 0.0
    %337 = vmatprep.subr.mxu0 0.0
    %338 = vmatpush1.msra.mxu0 0.0
    %339 = vmatprep.subr.mxu0 0.0
    %340 = vmatpush1.msra.mxu0 0.0
    %341 = vmatprep.subr.mxu0 0.0
    %342 = vmatpush1.msra.mxu0 0.0
    %343 = vmatprep.subr.mxu0 0.0
    %344 = vmatpush1.msra.mxu0 0.0
    %345 = vmatprep.subr.mxu0 0.0
    %346 = vmatpush1.msra.mxu0 0.0
    %347 = vmatprep.subr.mxu0 0.0
    %348 = vmatpush1.msra.mxu0 0.0
    %349 = vmatprep.subr.mxu0 0.0
    %350 = vmatpush1.msra.mxu0 0.0
    %351 = vmatprep.subr.mxu0 0.0
    %352 = vmatpush1.msra.mxu0 0.0
    %353 = vmatprep.subr.mxu0 0.0
    %354 = vmatpush1.msra.mxu0 0.0
    %355 = vmatprep.subr.mxu0 0.0
    %356 = vmatpush1.msra.mxu0 0.0
    %357 = vmatprep.subr.mxu0 0.0
    %358 = vmatpush1.msra.mxu0 0.0
    %359 = vmatprep.subr.mxu0 0.0
    %360 = vmatpush1.msra.mxu0 0.0
    %361 = vmatprep.subr.mxu0 0.0
    %362 = vmatpush1.msra.mxu0 0.0
    %363 = vmatprep.subr.mxu0 0.0
    %364 = vmatpush1.msra.mxu0 0.0
    %365 = vmatprep.subr.mxu0 0.0
    %366 = vmatpush1.msra.mxu0 0.0
    %367 = vmatprep.subr.mxu0 0.0
    %368 = vmatpush1.msra.mxu0 0.0
    %369 = vmatprep.subr.mxu0 0.0
    %370 = vmatpush1.msra.mxu0 0.0
    %371 = vmatprep.subr.mxu0 0.0
    %372 = vmatpush1.msra.mxu0 0.0
    %373 = vmatprep.mubr.f32.mxu0 0.0
    %374 = vmatmul.mubr.f32.gmra.mrb[0].mxu0 %v307
    %v375 = vpop.f32.mrb[0].mxu0
    %v376 = vadd.f32 %v303, %v375
    %v377 = vpop.f32.mrb[0].mxu0
    %378 = vdwg.mxu0
    %vm379 = vcmask 64512
    %v380 = vsel %vm379, %v376, -inf
    %381 = vmax.xlane.f32.xlu0 %v380
    %v382 = vpop.xlane.xlu0 %381
    %v383 = vsub.f32 %v376, %v382
    %v384 = vmul.f32 %v383, 1.442695
    %v385 = vpow.pop %v384
    %v386 = vsel %vm379, %v385, 0.0
    %387 = vadd.xlane.f32.xlu0 %v386
    %v388 = vpop.xlane.xlu0 %387
    %v389 = vrcp.pop %v388
    %v390 = vmul.f32 %v385, %v389
    %391 = vst.msk [vmem:[#allocation2] sm:$0xff] %vm379, %v390
    // Predicated region
    $region38: #{tpu_custom_call.1} parent=1 // pred_check
      _
    $region39: #{tpu_custom_call.1} parent=1 // pred_check_branch
      %393 = sbr.rel (0) target = $region41
    $region40: #{tpu_custom_call.1} parent=1 // pred_region
      %s395 = ssub.s32 128, 128
      %396 = vsyncadd [#allocation3], %s395
      %s398 = sshll.u32 [#allocation2], 4
      %s399 = int_to_ptr.vmem [resolvable:$true] %s398
      %401 = dma.vmem_to_hbm [thread:$0]  %s399, 128, %s9, [#allocation3]
    $region41: #{tpu_custom_call.1} parent=1 // pred_fallthru
      _
    // Predicated region
    $region42: #{tpu_custom_call.1} parent=1 // pred_check
      _
    $region43: #{tpu_custom_call.1} parent=1 // pred_check_branch
      %403 = sbr.rel (0) target = $region45
    $region44: #{tpu_custom_call.1} parent=1 // pred_region
      %404 = dma.done [#allocation3], 128
    $region45: #{tpu_custom_call.1} parent=1 // pred_fallthru
      _
    %405 = vsyncpa [#allocation3], 1

</llo_original>
